<compile_context>
chip_gen: v7x
topology: tpu7x:2x2x1
jax: 0.10.0
libtpu: 0.0.40
codegen_flags: <defaults>
</compile_context>

<pallas_src>
from typing import NamedTuple

import jax
import jax.numpy as jnp
from jax.experimental import pallas as pl
from jax.experimental.pallas import tpu as pltpu


# ---------------------------------------------------------------------------
# Helpers
# ---------------------------------------------------------------------------

def _round_up(x: int, m: int) -> int:
    return ((x + m - 1) // m) * m


def _largest_divisor_leq(n: int, cap: int) -> int:
    cap = max(1, min(n, cap))
    for d in range(cap, 0, -1):
        if n % d == 0:
            return d
    return 1


def _pick_tm(batch: int, max_tm: int) -> int:
    """M tile: full batch (8-aligned) if it fits, else minimize M padding."""
    if batch <= max_tm:
        return _round_up(batch, 8)
    best_tm, best_pad = None, None
    for cand in (512, 384, 256, 128):
        if cand > max_tm:
            continue
        pad = _round_up(batch, cand) - batch
        if best_pad is None or pad < best_pad or (pad == best_pad and cand > best_tm):
            best_tm, best_pad = cand, pad
    return best_tm or 128


# ---------------------------------------------------------------------------
# Kernels
# ---------------------------------------------------------------------------

def _linear_single_block_kernel(x_ref, w_ref, o_ref):
    # W is already (K, N): standard (M,K)x(K,N) contraction, no XLU transpose.
    # x tile cast to the weight's compute dtype (bf16 by default) right before
    # the dot; accumulation is f32 on the MXU.
    o_ref[...] = jnp.dot(
        x_ref[...].astype(w_ref.dtype),
        w_ref[...],
        preferred_element_type=jnp.float32,
    ).astype(o_ref.dtype)


def _linear_tiled_kernel(x_ref, w_ref, o_ref):
    # o_ref (f32) is the resident accumulator across the K grid axis (its
    # index_map ignores k) -> no VMEM scratch, no finalize copy.
    @pl.when(pl.program_id(2) == 0)
    def _init():
        o_ref[...] = jnp.zeros_like(o_ref)

    o_ref[...] += jnp.dot(
        x_ref[...].astype(w_ref.dtype),
        w_ref[...],
        preferred_element_type=jnp.float32,
    )


# ---------------------------------------------------------------------------
# Parameter prep (one-time, outside the per-call path)
# ---------------------------------------------------------------------------

class PreparedLinear(NamedTuple):
    wt: jax.Array      # (D_in, D_out) if not tiled, else (Kp, Np) zero-padded
    d_in: int
    d_out: int
    tiled: bool


def prepare_weight(w, compute_dtype=jnp.bfloat16, force_tiled=False) -> PreparedLinear:
    """One-time prep of the PyTorch (out, in) weight: transpose, cast, pad."""
    d_out, d_in = w.shape
    wt = w.T.astype(compute_dtype)                      # (D_in, D_out)

    itemsize = jnp.dtype(compute_dtype).itemsize
    small = (not force_tiled
             and d_in <= 4096 and d_out <= 4096
             and d_in * d_out * itemsize <= 4 * 1024 * 1024)
    if small:
        return PreparedLinear(wt, d_in, d_out, tiled=False)

    kp = _round_up(d_in, 128)
    np_ = _round_up(d_out, 128)
    if (kp, np_) != (d_in, d_out):
        wt = jnp.pad(wt, ((0, kp - d_in), (0, np_ - d_out)))
    return PreparedLinear(wt, d_in, d_out, tiled=True)


# ---------------------------------------------------------------------------
# Forward
# ---------------------------------------------------------------------------

def net_forward(x, prepared: PreparedLinear, *, max_tm=512, max_tn=512, max_tk=1024):
    """x: (B, D_in) -> (B, D_out), equivalent to nn.Linear(bias=False)."""
    B, d_in = x.shape
    assert d_in == prepared.d_in, "input feature dim must match the weight"
    d_out = prepared.d_out

    # ------------------------- small-weight path --------------------------
    if not prepared.tiled:
        wt = prepared.wt                                # (D_in, D_out), unpadded

        # Whole problem in one un-padded block (full-dim blocks are exempt from
        # the (8,128) divisibility rule).
        if B <= 512 and B * d_in * x.dtype.itemsize <= 4 * 1024 * 1024:
            out = pl.pallas_call(
                _linear_single_block_kernel,
                out_shape=jax.ShapeDtypeStruct((B, d_out), jnp.float32),
            )(x, wt)
            return out.astype(x.dtype)

        # Small weight, large batch: 1-D grid over M; W stays resident.
        m_cap = max_tm
        if d_in * m_cap * 4 > 4 * 1024 * 1024:           # keep x tile <= ~2 MiB/buffer
            m_cap = max(128, ((4 * 1024 * 1024) // (d_in * 4)) // 128 * 128)
        tm = _pick_tm(B, m_cap)
        Mp = _round_up(B, tm)
        x_p = x if Mp == B else jnp.pad(x, ((0, Mp - B), (0, 0)))

        out = pl.pallas_call(
            _linear_single_block_kernel,
            out_shape=jax.ShapeDtypeStruct((Mp, d_out), jnp.float32),
            grid=(Mp // tm,),
            in_specs=[
                pl.BlockSpec((tm, d_in), lambda i: (i, 0)),
                pl.BlockSpec((d_in, d_out), lambda i: (0, 0)),
            ],
            out_specs=pl.BlockSpec((tm, d_out), lambda i: (i, 0)),
            compiler_params=pltpu.CompilerParams(
                dimension_semantics=("parallel",),
                vmem_limit_bytes=32 * 1024 * 1024,
            ),
        )(x_p, wt)
        return out[:B].astype(x.dtype)

    # ---------------------------- tiled path -------------------------------
    Kp, Np = prepared.wt.shape
    tm = _pick_tm(B, max_tm)
    Mp = _round_up(B, tm)
    grid_m = Mp // tm

    nunits, kunits = Np // 128, Kp // 128
    tn_cap = max(1, max_tn // 128)
    if grid_m == 1 and nunits >= 2:
        # v7x megacore: keep >=2 parallel blocks on the N axis when M has only 1.
        tn_cap = min(tn_cap, max(1, nunits // 2))
    tn = 128 * _largest_divisor_leq(nunits, tn_cap)
    tk = 128 * _largest_divisor_leq(kunits, max(1, max_tk // 128))

    # Only x is padded per call (M and, if needed, K to match the stored weight).
    x_p = x
    if Mp != B or Kp != d_in:
        x_p = jnp.pad(x, ((0, Mp - B), (0, Kp - d_in)))

    grid = (grid_m, Np // tn, Kp // tk)

    cost = pl.CostEstimate(
        flops=2 * Mp * Np * Kp,
        transcendentals=0,
        bytes_accessed=(x_p.dtype.itemsize * Mp * Kp
                        + prepared.wt.dtype.itemsize * Kp * Np
                        + 4 * Mp * Np),
    )

    out = pl.pallas_call(
        _linear_tiled_kernel,
        out_shape=jax.ShapeDtypeStruct((Mp, Np), jnp.float32),
        grid=grid,
        in_specs=[
            pl.BlockSpec((tm, tk), lambda i, j, k: (i, k)),   # x tile  (M, K)
            pl.BlockSpec((tk, tn), lambda i, j, k: (k, j)),   # W tile  (K, N)
        ],
        out_specs=pl.BlockSpec((tm, tn), lambda i, j, k: (i, j)),
        compiler_params=pltpu.CompilerParams(
            dimension_semantics=("parallel", "parallel", "arbitrary"),
            vmem_limit_bytes=32 * 1024 * 1024,
        ),
        cost_estimate=cost,
    )(x_p, prepared.wt)

    return out[:B, :d_out].astype(x.dtype)


# ---------------------------------------------------------------------------
# Demo / correctness check
# ---------------------------------------------------------------------------

if __name__ == "__main__":
    # Shapes consistent with the module: Linear(input_size, output_size, bias=False)
    batch, input_size, output_size = 8, 32, 4

    key = jax.random.PRNGKey(0)
    kx, kw = jax.random.split(key)
    x = jax.random.normal(kx, (batch, input_size), dtype=jnp.float32)
    # nn.init.normal_(weight, 0.0, 1.0): standard normal, deterministic here.
    w = jax.random.normal(kw, (output_size, input_size), dtype=jnp.float32)

    y_ref = x @ w.T

    # 1) Default path: bf16 MXU operands, f32 accumulation (fast path, one block).
    params_bf16 = prepare_weight(w)                      # bf16, transposed, unpadded
    y = net_forward(x, params_bf16)
    jax.block_until_ready(y)
    assert y.shape == (batch, output_size)
    assert jnp.allclose(y, y_ref, atol=2e-1, rtol=5e-2)

    # 2) Exact f32 compute path (bit-for-bit intent of f32 nn.Linear).
    params_f32 = prepare_weight(w, compute_dtype=jnp.float32)
    y32 = net_forward(x, params_f32)
    jax.block_until_ready(y32)
    assert jnp.allclose(y32, y_ref, atol=1e-5, rtol=1e-5)

    # 3) Exercise the tiled 3-D grid / K-reduction path on modest shapes.
    B2, D_in2, D_out2 = 48, 512, 384
    x2 = jax.random.normal(jax.random.PRNGKey(1), (B2, D_in2), dtype=jnp.float32)
    w2 = jax.random.normal(jax.random.PRNGKey(2), (D_out2, D_in2), dtype=jnp.float32)
    params2 = prepare_weight(w2, compute_dtype=jnp.float32, force_tiled=True)
    y2 = net_forward(x2, params2, max_tn=128, max_tk=256)   # grid = (1, 3, 2)
    jax.block_until_ready(y2)
    assert jnp.allclose(y2, x2 @ w2.T, atol=1e-3, rtol=1e-3)

    print("KERNEL_OK")
</pallas_src>

<mosaic_0001>
module attributes {stable_mosaic.version = 11 : i64} {
  func.func @_linear_single_block_kernel(%arg0: memref<8x32xf32, #tpu.memory_space<vmem>>, %arg1: memref<32x4xbf16, #tpu.memory_space<vmem>>, %arg2: memref<8x4xf32, #tpu.memory_space<vmem>>) attributes {dimension_semantics = [], scalar_prefetch = 0 : i64, scratch_operands = 0 : i64, tpu.core_type = #tpu.core_type<tc>} {
    %c0 = arith.constant 0 : index
    %c0_0 = arith.constant 0 : index
    %0 = vector.load %arg0[%c0, %c0_0] : memref<8x32xf32, #tpu.memory_space<vmem>>, vector<8x32xf32>
    %1 = arith.truncf %0 : vector<8x32xf32> to vector<8x32xbf16>
    %c0_1 = arith.constant 0 : index
    %c0_2 = arith.constant 0 : index
    %2 = vector.load %arg1[%c0_1, %c0_2] : memref<32x4xbf16, #tpu.memory_space<vmem>>, vector<32x4xbf16>
    %cst = arith.constant dense<0.000000e+00> : vector<8x4xf32>
    %3 = tpu.matmul %1, %2, %cst {dimension_numbers = #tpu.dot_dimension_numbers<[1], [0], [0], [1], [0, 0, 1, 1], [], []>} : vector<8x32xbf16>, vector<32x4xbf16>, vector<8x4xf32> -> vector<8x4xf32>
    %c0_3 = arith.constant 0 : index
    %c0_4 = arith.constant 0 : index
    %4 = vector.load %arg2[%c0_3, %c0_4] : memref<8x4xf32, #tpu.memory_space<vmem>>, vector<8x4xf32>
    tpu.vector_store %arg2[%c0_3, %c0_4], %3 {strides = array<i32>} : memref<8x4xf32, #tpu.memory_space<vmem>>, vector<8x4xf32>,
    return
  }
}

</mosaic_0001>

<llo_original>
// kernel: tpu_custom_call.1
$region0: #{tpu_custom_call.1}
  #allocation0 [shape = 'u32[]', space=smem, size = 0x4, offset = 0x4, fixed_abs, tag = 'smem constant byte address 0x4 - core index']
  #allocation1 [shape = 'u32[144,128]{1,0:T(1,128)}', space=vmem, size = 0x12000, scoped, tag = 'internal scratch']
  %s0 = inlined_call_operand.vmem [shape: f32[8,32], index: 0, kind: input, shape index: {}]
  %s1 = inlined_call_operand.vmem [shape: bf16[32,4], index: 1, kind: input, shape index: {}]
  %s2 = inlined_call_operand.vmem [shape: f32[8,4], index: 2, kind: output, shape index: {}]
  %s3 = sld [smem:[#allocation0]]
  $region18: #{tpu_custom_call.1} parent=0
    _
  %s5 = ssub.s32 1, %s3
  %s6 = scalar_select 0, %s5, %s3
  // Predicated region
  $region2: #{tpu_custom_call.1} parent=0 // pred_check
    _
  $region3: #{tpu_custom_call.1} parent=0 // pred_check_branch
    %8 = sbr.rel (0) target = $region5
  $region4: #{tpu_custom_call.1} parent=0 // pred_region
    _
  $region5: #{tpu_custom_call.1} parent=0 // pred_fallthru
    _
  // Predicated region
  $region6: #{tpu_custom_call.1} parent=0 // pred_check
    _
  $region7: #{tpu_custom_call.1} parent=0 // pred_check_branch
    %10 = sbr.rel (0) target = $region9
  $region8: #{tpu_custom_call.1} parent=0 // pred_region
    _
  $region9: #{tpu_custom_call.1} parent=0 // pred_fallthru
    _
  %v12 = vld [vmem:[%s0] sm:$0xff]
  %v13 = vpack.c.bf16 %v12, %v12
  %v14 = vld [vmem:[%s1] sm:$0xf]
  %v15 = vld [vmem:[%s1 + $0x4] sm:$0xf]
  %v16 = vld [vmem:[%s1 + $0x8] sm:$0xf]
  %v17 = vld [vmem:[%s1 + $0xc] sm:$0xf]
  %v22 = vunpack.c.l.b16 %v14
  %v23 = vunpack.c.l.b16 %v15
  %v24 = vunpack.c.l.b16 %v16
  %v25 = vunpack.c.l.b16 %v17
  %v26 = vpack.c.b16 %v23, %v22
  %v27 = vpack.c.b16 %v25, %v24
  %vm30 = vcmask 261120
  %v32 = vsel %vm30, %v13, 0
  %34 = vmatprep.subr.bf16.mxu0 0
  %35 = vmatpush1.bf16.msra.mxu0 %v26
  %36 = vmatprep.subr.bf16.mxu0 0
  %37 = vmatpush1.bf16.msra.mxu0 %v27
  %38 = vmatprep.subr.bf16.mxu0 0
  %39 = vmatpush1.bf16.msra.mxu0 0
  %40 = vmatprep.subr.bf16.mxu0 0
  %41 = vmatpush1.bf16.msra.mxu0 0
  %42 = vmatprep.subr.bf16.mxu0 0
  %43 = vmatpush1.bf16.msra.mxu0 0
  %44 = vmatprep.subr.bf16.mxu0 0
  %45 = vmatpush1.bf16.msra.mxu0 0
  %46 = vmatprep.subr.bf16.mxu0 0
  %47 = vmatpush1.bf16.msra.mxu0 0
  %48 = vmatprep.subr.bf16.mxu0 0
  %49 = vmatpush1.bf16.msra.mxu0 0
  %50 = vmatprep.subr.bf16.mxu0 0
  %51 = vmatpush1.bf16.msra.mxu0 0
  %52 = vmatprep.subr.bf16.mxu0 0
  %53 = vmatpush1.bf16.msra.mxu0 0
  %54 = vmatprep.subr.bf16.mxu0 0
  %55 = vmatpush1.bf16.msra.mxu0 0
  %56 = vmatprep.subr.bf16.mxu0 0
  %57 = vmatpush1.bf16.msra.mxu0 0
  %58 = vmatprep.subr.bf16.mxu0 0
  %59 = vmatpush1.bf16.msra.mxu0 0
  %60 = vmatprep.subr.bf16.mxu0 0
  %61 = vmatpush1.bf16.msra.mxu0 0
  %62 = vmatprep.subr.bf16.mxu0 0
  %63 = vmatpush1.bf16.msra.mxu0 0
  %64 = vmatprep.subr.bf16.mxu0 0
  %65 = vmatpush1.bf16.msra.mxu0 0
  %66 = vmatprep.mubr.bf16.mxu0 0
  %67 = vmatmul.mubr.bf16.gmra.mrb[0].mxu0 %v32
  %v68 = vpop.f32.mrb[0].mxu0
  %v69 = vadd.f32 0.0, %v68
  %v70 = vpop.f32.mrb[0].mxu0
  %v71 = vpop.f32.mrb[0].mxu0
  %v72 = vpop.f32.mrb[0].mxu0
  %73 = vdwg.mxu0
  %vm74 = vcmask 31744
  %75 = vst.msk [vmem:[%s2] sm:$0xff] %vm74, %v69
  // Predicated region
  $region10: #{tpu_custom_call.1} parent=0 // pred_check
    _
  $region11: #{tpu_custom_call.1} parent=0 // pred_check_branch
    %77 = sbr.rel (0) target = $region13
  $region12: #{tpu_custom_call.1} parent=0 // pred_region
    _
  $region13: #{tpu_custom_call.1} parent=0 // pred_fallthru
    _
  // Predicated region
  $region14: #{tpu_custom_call.1} parent=0 // pred_check
    _
  $region15: #{tpu_custom_call.1} parent=0 // pred_check_branch
    %79 = sbr.rel (0) target = $region17
  $region16: #{tpu_custom_call.1} parent=0 // pred_region
    _
  $region17: #{tpu_custom_call.1} parent=0 // pred_fallthru
    _

</llo_original>
